<compile_context>
chip_gen: v5e
topology: v5e:2x2
jax: 0.10.0
libtpu: 0.0.40
codegen_flags: <defaults>
</compile_context>

<pallas_src>
import numpy as np
import jax
import jax.numpy as jnp
from jax.experimental import pallas as pl
from jax.experimental.pallas import tpu as pltpu

# ----------------------------- configuration -------------------------------
SEQ_LEN = 8
EMB_DIM = 32
NUM_HEADS = 4
HEAD_DIM = EMB_DIM // NUM_HEADS
HIDDEN_FF = 64
PXL_SIZE = 16          # unused by the forward pass (kept for parity)
BATCH_BLOCK = 8        # sequences processed per grid step


# --------------------- sinusoidal position encoding ------------------------
def get_position_encoding(seq_len, d, n=10000):
    # Exact re-implementation of getPositionEncoding (numpy, then cast to f32).
    P = np.zeros((seq_len, d))
    for k in range(seq_len):
        for i in np.arange(int(d / 2)):
            denominator = np.power(n, 2 * i / d)
            P[k, 2 * i] = np.sin(k / denominator)
            P[k, 2 * i + 1] = np.cos(k / denominator)
    return jnp.asarray(P, dtype=jnp.float32)


# ------------------------- host-side mask builders --------------------------
def build_masks(seq_len, tb):
    """Masks for the all-heads / all-sequences-in-block attention matmuls.

    Rows of the scores matrix are ordered (b, i) with b the sequence inside the
    block; columns are ordered (h, b, j).  Only columns with the same sequence
    b and j <= i (causal) are allowed.
    """
    S, H, D, E = seq_len, NUM_HEADS, HEAD_DIM, EMB_DIM
    R = tb * S            # query rows     (b, i)
    C = H * tb * S        # score columns  (h, b, j)

    row_b = np.arange(R) // S
    row_i = np.arange(R) % S
    col_h = np.arange(C) // (tb * S)
    col_b = (np.arange(C) // S) % tb
    col_j = np.arange(C) % S

    allowed = (col_b[None, :] == row_b[:, None]) & \
              (col_j[None, :] <= row_i[:, None])
    mask_qk = np.where(allowed, 0.0, -1e9).astype(np.float32)        # (R, C)

    feat_h = np.arange(E) // D                                       # head of feature
    bd_k = (feat_h[:, None] == col_h[None, :]).astype(np.float32)    # (E, C)

    seg = col_h * tb + col_b                                         # (head, seq) segment
    bd_seg = (seg[:, None] == seg[None, :]).astype(np.float32)       # (C, C)

    bd_v = (col_h[:, None] == feat_h[None, :]).astype(np.float32)    # (C, E)

    return (jnp.asarray(mask_qk), jnp.asarray(bd_k),
            jnp.asarray(bd_seg), jnp.asarray(bd_v))


# ------------------------------ Pallas kernel -------------------------------
def encoder_kernel(x_ref, pos_ref, wqkv_ref, bqkv_ref,
                   mask_ref, bdk_ref, bdseg_ref, bdv_ref,
                   w1_ref, b1_ref, w2_ref, b2_ref,
                   out_ref):
    # x_ref is a (TB*S, E) block: TB sequences folded into the row dimension.
    x = x_ref[...] + pos_ref[...]                                      # (TB*S, E)

    # fused Q/K/V projection: one MXU matmul + one bias add
    qkv = jnp.dot(x, wqkv_ref[...],
                  preferred_element_type=jnp.float32) + bqkv_ref[...]  # (TB*S, 3E)
    q = qkv[:, :EMB_DIM]
    k = qkv[:, EMB_DIM:2 * EMB_DIM]
    v = qkv[:, 2 * EMB_DIM:]

    scale = jnp.float32(1.0 / (HEAD_DIM ** 0.5))

    # Block-diagonal K^T: column (h, b, j) holds k[b,j, head-h features].
    k_bd = jnp.tile(k.T, (1, NUM_HEADS)) * bdk_ref[...]                # (E, H*TB*S)
    scores = jnp.dot(q, k_bd,
                     preferred_element_type=jnp.float32) * scale
    scores = scores + mask_ref[...]                                    # causal + cross-seq

    # Segmented (per head, per sequence) softmax.  Masked columns underflow to
    # exactly 0 after exp; fully-masked segments (other sequences in the block)
    # get a clamped denominator so probs stay exactly 0 (no NaN/Inf).
    m = jnp.max(scores, axis=-1, keepdims=True)
    p = jnp.exp(scores - m)
    denom = jnp.dot(p, bdseg_ref[...],
                    preferred_element_type=jnp.float32)                # (TB*S, H*TB*S)
    inv = pl.reciprocal(jnp.maximum(denom, jnp.float32(1e-30)), approx=False)
    probs = p * inv

    # Block-diagonal V: row (h, b, j) holds v[b,j, head-h features].
    v_bd = jnp.tile(v, (NUM_HEADS, 1)) * bdv_ref[...]                  # (H*TB*S, E)
    attn = jnp.dot(probs, v_bd, preferred_element_type=jnp.float32)    # (TB*S, E)

    # feedforward: Linear -> ReLU -> Linear
    h1 = jnp.dot(attn, w1_ref[...],
                 preferred_element_type=jnp.float32) + b1_ref[...]
    h1 = jnp.maximum(h1, 0.0)
    out_ref[...] = jnp.dot(h1, w2_ref[...],
                           preferred_element_type=jnp.float32) + b2_ref[...]


# ------------------------------ wrapper -------------------------------------
def encoder_layer_forward(x, params, batch_block=BATCH_BLOCK):
    """Accepts (S, E) like the PyTorch module, or (B, S, E) batched."""
    squeeze = (x.ndim == 2)
    if squeeze:
        x = x[None]
    B, S, E = x.shape

    tb = min(B, batch_block)
    b_pad = ((B + tb - 1) // tb) * tb
    if b_pad != B:
        x = jnp.concatenate(
            [x, jnp.zeros((b_pad - B, S, E), x.dtype)], axis=0)
    x2 = x.reshape(b_pad * S, E)

    pos = get_position_encoding(S, E)
    pos_tiled = jnp.tile(pos, (tb, 1))                         # (TB*S, E)
    mask_qk, bd_k, bd_seg, bd_v = build_masks(S, tb)

    # fuse Q/K/V weights: (E, 3E) and (1, 3E)
    wqkv = jnp.concatenate([params["wq"], params["wk"], params["wv"]], axis=1)
    bqkv = jnp.concatenate([params["bq"], params["bk"], params["bv"]], axis=1)

    inputs = [
        x2, pos_tiled, wqkv, bqkv,
        mask_qk, bd_k, bd_seg, bd_v,
        params["w1"], params["b1"], params["w2"], params["b2"],
    ]

    in_specs = [pl.BlockSpec((tb * S, E), lambda i: (i, 0))]
    in_specs += [pl.BlockSpec(a.shape, lambda i: (0, 0)) for a in inputs[1:]]

    out = pl.pallas_call(
        encoder_kernel,
        out_shape=jax.ShapeDtypeStruct((b_pad * S, E), jnp.float32),
        grid=(b_pad // tb,),
        in_specs=in_specs,
        out_specs=pl.BlockSpec((tb * S, E), lambda i: (i, 0)),
        compiler_params=pltpu.CompilerParams(
            dimension_semantics=("parallel",)),
    )(*inputs)

    out = out.reshape(b_pad, S, E)[:B]
    return out[0] if squeeze else out


# ------------------------- deterministic params ------------------------------
def init_params(key):
    ks = jax.random.split(key, 10)

    def lin(kw, kb, fan_in, fan_out):
        # PyTorch Linear stores (out, in); we pre-transpose to (in, out).
        bound = 1.0 / np.sqrt(fan_in)
        w = jax.random.uniform(kw, (fan_in, fan_out), jnp.float32, -bound, bound)
        b = jax.random.uniform(kb, (1, fan_out), jnp.float32, -bound, bound)
        return w, b

    wq, bq = lin(ks[0], ks[1], EMB_DIM, EMB_DIM)
    wk, bk = lin(ks[2], ks[3], EMB_DIM, EMB_DIM)
    wv, bv = lin(ks[4], ks[5], EMB_DIM, EMB_DIM)
    w1, b1 = lin(ks[6], ks[7], EMB_DIM, HIDDEN_FF)
    w2, b2 = lin(ks[8], ks[9], HIDDEN_FF, EMB_DIM)
    # TODO(synk): attn_embedding_bias is declared in the module but never used
    # in its forward(), so it is intentionally omitted here.
    return dict(wq=wq, bq=bq, wk=wk, bk=bk, wv=wv, bv=bv,
                w1=w1, b1=b1, w2=w2, b2=b2)


# ------------------------- pure-JAX reference --------------------------------
def reference_forward(x, params):
    S, E = x.shape
    emb = x + get_position_encoding(S, E)
    q = emb @ params["wq"] + params["bq"]
    k = emb @ params["wk"] + params["bk"]
    v = emb @ params["wv"] + params["bv"]
    q = q.reshape(S, NUM_HEADS, HEAD_DIM).transpose(1, 0, 2)
    k = k.reshape(S, NUM_HEADS, HEAD_DIM).transpose(1, 0, 2)
    v = v.reshape(S, NUM_HEADS, HEAD_DIM).transpose(1, 0, 2)
    sim = jnp.einsum("hqd,hkd->hqk", q, k) / (HEAD_DIM ** 0.5)
    mask = jnp.triu(jnp.ones_like(sim), k=1) * -1e9
    p = jax.nn.softmax(sim + mask, axis=-1)
    attn = jnp.einsum("hqk,hkd->hqd", p, v).transpose(1, 0, 2).reshape(S, E)
    h1 = jnp.maximum(attn @ params["w1"] + params["b1"], 0.0)
    return h1 @ params["w2"] + params["b2"]


if __name__ == "__main__":
    key = jax.random.PRNGKey(0)
    k_x, k_p, k_b, k_c = jax.random.split(key, 4)
    params = init_params(k_p)

    # --- single sequence, matching the PyTorch module's forward signature ---
    x = jax.random.normal(k_x, (SEQ_LEN, EMB_DIM), jnp.float32)
    out = jax.block_until_ready(encoder_layer_forward(x, params))
    ref = reference_forward(x, params)
    assert out.shape == (SEQ_LEN, EMB_DIM)
    np.testing.assert_allclose(np.asarray(out), np.asarray(ref),
                               rtol=1e-4, atol=1e-4)

    # --- batched path: one grid step covering all 4 sequences ---------------
    xb = jax.random.normal(k_b, (4, SEQ_LEN, EMB_DIM), jnp.float32)
    outb = jax.block_until_ready(encoder_layer_forward(xb, params))
    refb = jax.vmap(lambda s: reference_forward(s, params))(xb)
    np.testing.assert_allclose(np.asarray(outb), np.asarray(refb),
                               rtol=1e-4, atol=1e-4)

    # --- batched path with padding + multi-step grid (B=10 -> 2 steps of 8) --
    xc = jax.random.normal(k_c, (10, SEQ_LEN, EMB_DIM), jnp.float32)
    outc = jax.block_until_ready(encoder_layer_forward(xc, params))
    refc = jax.vmap(lambda s: reference_forward(s, params))(xc)
    np.testing.assert_allclose(np.asarray(outc), np.asarray(refc),
                               rtol=1e-4, atol=1e-4)

    print("KERNEL_OK")
</pallas_src>

<mosaic_0001>
module attributes {stable_mosaic.version = 11 : i64} {
  func.func @encoder_kernel(%arg0: i32, %arg1: memref<8x32xf32, #tpu.memory_space<vmem>>, %arg2: memref<8x32xf32, #tpu.memory_space<vmem>>, %arg3: memref<32x96xf32, #tpu.memory_space<vmem>>, %arg4: memref<1x96xf32, #tpu.memory_space<vmem>>, %arg5: memref<8x32xf32, #tpu.memory_space<vmem>>, %arg6: memref<32x32xf32, #tpu.memory_space<vmem>>, %arg7: memref<32x32xf32, #tpu.memory_space<vmem>>, %arg8: memref<32x32xf32, #tpu.memory_space<vmem>>, %arg9: memref<32x64xf32, #tpu.memory_space<vmem>>, %arg10: memref<1x64xf32, #tpu.memory_space<vmem>>, %arg11: memref<64x32xf32, #tpu.memory_space<vmem>>, %arg12: memref<1x32xf32, #tpu.memory_space<vmem>>, %arg13: memref<8x32xf32, #tpu.memory_space<vmem>>) attributes {dimension_semantics = [#tpu.dimension_semantics<parallel>], iteration_bounds = array<i64: 1>, scalar_prefetch = 0 : i64, scratch_operands = 0 : i64, tpu.core_type = #tpu.core_type<tc>, window_params = [{transform_indices = @transform_0, window_bounds = array<i64: 8, 32>}, {pipeline_mode = #tpu.pipeline_mode<synchronous>, transform_indices = @transform_1, window_bounds = array<i64: 8, 32>}, {pipeline_mode = #tpu.pipeline_mode<synchronous>, transform_indices = @transform_2, window_bounds = array<i64: 32, 96>}, {pipeline_mode = #tpu.pipeline_mode<synchronous>, transform_indices = @transform_3, window_bounds = array<i64: 1, 96>}, {pipeline_mode = #tpu.pipeline_mode<synchronous>, transform_indices = @transform_4, window_bounds = array<i64: 8, 32>}, {pipeline_mode = #tpu.pipeline_mode<synchronous>, transform_indices = @transform_5, window_bounds = array<i64: 32, 32>}, {pipeline_mode = #tpu.pipeline_mode<synchronous>, transform_indices = @transform_6, window_bounds = array<i64: 32, 32>}, {pipeline_mode = #tpu.pipeline_mode<synchronous>, transform_indices = @transform_7, window_bounds = array<i64: 32, 32>}, {pipeline_mode = #tpu.pipeline_mode<synchronous>, transform_indices = @transform_8, window_bounds = array<i64: 32, 64>}, {pipeline_mode = #tpu.pipeline_mode<synchronous>, transform_indices = @transform_9, window_bounds = array<i64: 1, 64>}, {pipeline_mode = #tpu.pipeline_mode<synchronous>, transform_indices = @transform_10, window_bounds = array<i64: 64, 32>}, {pipeline_mode = #tpu.pipeline_mode<synchronous>, transform_indices = @transform_11, window_bounds = array<i64: 1, 32>}, {transform_indices = @transform_12, window_bounds = array<i64: 8, 32>}]} {
    %c0 = arith.constant 0 : index
    %c0_0 = arith.constant 0 : index
    %0 = vector.load %arg1[%c0, %c0_0] : memref<8x32xf32, #tpu.memory_space<vmem>>, vector<8x32xf32>
    %c0_1 = arith.constant 0 : index
    %c0_2 = arith.constant 0 : index
    %1 = vector.load %arg2[%c0_1, %c0_2] : memref<8x32xf32, #tpu.memory_space<vmem>>, vector<8x32xf32>
    %2 = arith.addf %0, %1 : vector<8x32xf32>
    %c0_3 = arith.constant 0 : index
    %c0_4 = arith.constant 0 : index
    %3 = vector.load %arg3[%c0_3, %c0_4] : memref<32x96xf32, #tpu.memory_space<vmem>>, vector<32x96xf32>
    %cst = arith.constant dense<0.000000e+00> : vector<8x96xf32>
    %4 = tpu.matmul %2, %3, %cst {dimension_numbers = #tpu.dot_dimension_numbers<[1], [0], [0], [1], [0, 0, 1, 1], [], []>} : vector<8x32xf32>, vector<32x96xf32>, vector<8x96xf32> -> vector<8x96xf32>
    %c0_5 = arith.constant 0 : index
    %c0_6 = arith.constant 0 : index
    %5 = vector.load %arg4[%c0_5, %c0_6] : memref<1x96xf32, #tpu.memory_space<vmem>>, vector<1x96xf32>
    %6 = vector.broadcast %5 : vector<1x96xf32> to vector<8x96xf32>
    %7 = arith.addf %4, %6 : vector<8x96xf32>
    %8 = vector.extract_strided_slice %7 {offsets = [0, 0], sizes = [8, 32], strides = [1, 1]} : vector<8x96xf32> to vector<8x32xf32>
    %9 = vector.extract_strided_slice %7 {offsets = [0, 32], sizes = [8, 32], strides = [1, 1]} : vector<8x96xf32> to vector<8x32xf32>
    %10 = vector.extract_strided_slice %7 {offsets = [0, 64], sizes = [8, 32], strides = [1, 1]} : vector<8x96xf32> to vector<8x32xf32>
    %11 = tpu.transpose %9, [1, 0] : vector<8x32xf32> -> vector<32x8xf32>
    %12 = tpu.concatenate %11, %11, %11, %11 in 1 : vector<32x8xf32>, vector<32x8xf32>, vector<32x8xf32>, vector<32x8xf32> -> vector<32x32xf32>
    %c0_7 = arith.constant 0 : index
    %c0_8 = arith.constant 0 : index
    %13 = vector.load %arg6[%c0_7, %c0_8] : memref<32x32xf32, #tpu.memory_space<vmem>>, vector<32x32xf32>
    %14 = arith.mulf %12, %13 : vector<32x32xf32>
    %cst_9 = arith.constant dense<0.000000e+00> : vector<8x32xf32>
    %15 = tpu.matmul %8, %14, %cst_9 {dimension_numbers = #tpu.dot_dimension_numbers<[1], [0], [0], [1], [0, 0, 1, 1], [], []>} : vector<8x32xf32>, vector<32x32xf32>, vector<8x32xf32> -> vector<8x32xf32>
    %cst_10 = arith.constant 0.353553385 : f32
    %16 = vector.broadcast %cst_10 : f32 to vector<8x32xf32>
    %17 = arith.mulf %15, %16 : vector<8x32xf32>
    %c0_11 = arith.constant 0 : index
    %c0_12 = arith.constant 0 : index
    %18 = vector.load %arg5[%c0_11, %c0_12] : memref<8x32xf32, #tpu.memory_space<vmem>>, vector<8x32xf32>
    %19 = arith.addf %17, %18 : vector<8x32xf32>
    %cst_13 = arith.constant dense<0xFF800000> : vector<8xf32>
    %20 = vector.multi_reduction <maximumf>, %19, %cst_13 [1] : vector<8x32xf32> to vector<8xf32>
    %21 = vector.shape_cast %20 : vector<8xf32> to vector<8x1xf32>
    %22 = vector.broadcast %21 : vector<8x1xf32> to vector<8x32xf32>
    %23 = arith.subf %19, %22 : vector<8x32xf32>
    %24 = math.exp %23 : vector<8x32xf32>
    %c0_14 = arith.constant 0 : index
    %c0_15 = arith.constant 0 : index
    %25 = vector.load %arg7[%c0_14, %c0_15] : memref<32x32xf32, #tpu.memory_space<vmem>>, vector<32x32xf32>
    %cst_16 = arith.constant dense<0.000000e+00> : vector<8x32xf32>
    %26 = tpu.matmul %24, %25, %cst_16 {dimension_numbers = #tpu.dot_dimension_numbers<[1], [0], [0], [1], [0, 0, 1, 1], [], []>} : vector<8x32xf32>, vector<32x32xf32>, vector<8x32xf32> -> vector<8x32xf32>
    %cst_17 = arith.constant 1.000000e-30 : f32
    %27 = vector.broadcast %cst_17 : f32 to vector<8x32xf32>
    %28 = arith.maximumf %26, %27 : vector<8x32xf32>
    %29 = tpu.reciprocal %28 : vector<8x32xf32> -> vector<8x32xf32>
    %30 = arith.mulf %24, %29 : vector<8x32xf32>
    %31 = tpu.concatenate %10, %10, %10, %10 in 0 : vector<8x32xf32>, vector<8x32xf32>, vector<8x32xf32>, vector<8x32xf32> -> vector<32x32xf32>
    %c0_18 = arith.constant 0 : index
    %c0_19 = arith.constant 0 : index
    %32 = vector.load %arg8[%c0_18, %c0_19] : memref<32x32xf32, #tpu.memory_space<vmem>>, vector<32x32xf32>
    %33 = arith.mulf %31, %32 : vector<32x32xf32>
    %cst_20 = arith.constant dense<0.000000e+00> : vector<8x32xf32>
    %34 = tpu.matmul %30, %33, %cst_20 {dimension_numbers = #tpu.dot_dimension_numbers<[1], [0], [0], [1], [0, 0, 1, 1], [], []>} : vector<8x32xf32>, vector<32x32xf32>, vector<8x32xf32> -> vector<8x32xf32>
    %c0_21 = arith.constant 0 : index
    %c0_22 = arith.constant 0 : index
    %35 = vector.load %arg9[%c0_21, %c0_22] : memref<32x64xf32, #tpu.memory_space<vmem>>, vector<32x64xf32>
    %cst_23 = arith.constant dense<0.000000e+00> : vector<8x64xf32>
    %36 = tpu.matmul %34, %35, %cst_23 {dimension_numbers = #tpu.dot_dimension_numbers<[1], [0], [0], [1], [0, 0, 1, 1], [], []>} : vector<8x32xf32>, vector<32x64xf32>, vector<8x64xf32> -> vector<8x64xf32>
    %c0_24 = arith.constant 0 : index
    %c0_25 = arith.constant 0 : index
    %37 = vector.load %arg10[%c0_24, %c0_25] : memref<1x64xf32, #tpu.memory_space<vmem>>, vector<1x64xf32>
    %38 = vector.broadcast %37 : vector<1x64xf32> to vector<8x64xf32>
    %39 = arith.addf %36, %38 : vector<8x64xf32>
    %cst_26 = arith.constant 0.000000e+00 : f32
    %40 = vector.broadcast %cst_26 : f32 to vector<8x64xf32>
    %41 = arith.maximumf %39, %40 : vector<8x64xf32>
    %c0_27 = arith.constant 0 : index
    %c0_28 = arith.constant 0 : index
    %42 = vector.load %arg11[%c0_27, %c0_28] : memref<64x32xf32, #tpu.memory_space<vmem>>, vector<64x32xf32>
    %cst_29 = arith.constant dense<0.000000e+00> : vector<8x32xf32>
    %43 = tpu.matmul %41, %42, %cst_29 {dimension_numbers = #tpu.dot_dimension_numbers<[1], [0], [0], [1], [0, 0, 1, 1], [], []>} : vector<8x64xf32>, vector<64x32xf32>, vector<8x32xf32> -> vector<8x32xf32>
    %c0_30 = arith.constant 0 : index
    %c0_31 = arith.constant 0 : index
    %44 = vector.load %arg12[%c0_30, %c0_31] : memref<1x32xf32, #tpu.memory_space<vmem>>, vector<1x32xf32>
    %45 = vector.broadcast %44 : vector<1x32xf32> to vector<8x32xf32>
    %46 = arith.addf %43, %45 : vector<8x32xf32>
    %c0_32 = arith.constant 0 : index
    %c0_33 = arith.constant 0 : index
    %47 = vector.load %arg13[%c0_32, %c0_33] : memref<8x32xf32, #tpu.memory_space<vmem>>, vector<8x32xf32>
    tpu.vector_store %arg13[%c0_32, %c0_33], %46 {strides = array<i32>} : memref<8x32xf32, #tpu.memory_space<vmem>>, vector<8x32xf32>,
    return
  }
  func.func @transform_0(%arg0: i32) -> (i32, i32) {
    %c0_i32 = arith.constant 0 : i32
    %c0_i32_0 = arith.constant 0 : i32
    return %arg0, %c0_i32 : i32, i32
  }
  func.func @transform_1(%arg0: i32) -> (i32, i32) {
    %c0_i32 = arith.constant 0 : i32
    %c0_i32_0 = arith.constant 0 : i32
    %c0_i32_1 = arith.constant 0 : i32
    return %c0_i32, %c0_i32_0 : i32, i32
  }
  func.func @transform_2(%arg0: i32) -> (i32, i32) {
    %c0_i32 = arith.constant 0 : i32
    %c0_i32_0 = arith.constant 0 : i32
    %c0_i32_1 = arith.constant 0 : i32
    return %c0_i32, %c0_i32_0 : i32, i32
  }
  func.func @transform_3(%arg0: i32) -> (i32, i32) {
    %c0_i32 = arith.constant 0 : i32
    %c0_i32_0 = arith.constant 0 : i32
    %c0_i32_1 = arith.constant 0 : i32
    return %c0_i32, %c0_i32_0 : i32, i32
  }
  func.func @transform_4(%arg0: i32) -> (i32, i32) {
    %c0_i32 = arith.constant 0 : i32
    %c0_i32_0 = arith.constant 0 : i32
    %c0_i32_1 = arith.constant 0 : i32
    return %c0_i32, %c0_i32_0 : i32, i32
  }
  func.func @transform_5(%arg0: i32) -> (i32, i32) {
    %c0_i32 = arith.constant 0 : i32
    %c0_i32_0 = arith.constant 0 : i32
    %c0_i32_1 = arith.constant 0 : i32
    return %c0_i32, %c0_i32_0 : i32, i32
  }
  func.func @transform_6(%arg0: i32) -> (i32, i32) {
    %c0_i32 = arith.constant 0 : i32
    %c0_i32_0 = arith.constant 0 : i32
    %c0_i32_1 = arith.constant 0 : i32
    return %c0_i32, %c0_i32_0 : i32, i32
  }
  func.func @transform_7(%arg0: i32) -> (i32, i32) {
    %c0_i32 = arith.constant 0 : i32
    %c0_i32_0 = arith.constant 0 : i32
    %c0_i32_1 = arith.constant 0 : i32
    return %c0_i32, %c0_i32_0 : i32, i32
  }
  func.func @transform_8(%arg0: i32) -> (i32, i32) {
    %c0_i32 = arith.constant 0 : i32
    %c0_i32_0 = arith.constant 0 : i32
    %c0_i32_1 = arith.constant 0 : i32
    return %c0_i32, %c0_i32_0 : i32, i32
  }
  func.func @transform_9(%arg0: i32) -> (i32, i32) {
    %c0_i32 = arith.constant 0 : i32
    %c0_i32_0 = arith.constant 0 : i32
    %c0_i32_1 = arith.constant 0 : i32
    return %c0_i32, %c0_i32_0 : i32, i32
  }
  func.func @transform_10(%arg0: i32) -> (i32, i32) {
    %c0_i32 = arith.constant 0 : i32
    %c0_i32_0 = arith.constant 0 : i32
    %c0_i32_1 = arith.constant 0 : i32
    return %c0_i32, %c0_i32_0 : i32, i32
  }
  func.func @transform_11(%arg0: i32) -> (i32, i32) {
    %c0_i32 = arith.constant 0 : i32
    %c0_i32_0 = arith.constant 0 : i32
    %c0_i32_1 = arith.constant 0 : i32
    return %c0_i32, %c0_i32_0 : i32, i32
  }
  func.func @transform_12(%arg0: i32) -> (i32, i32) {
    %c0_i32 = arith.constant 0 : i32
    %c0_i32_0 = arith.constant 0 : i32
    return %arg0, %c0_i32 : i32, i32
  }
}

</mosaic_0001>

<llo_original>
// kernel: tpu_custom_call.1
$region0: #{tpu_custom_call.1}
  #allocation0 [shape = 'u32[]', space=smem, size = 0x4, offset = 0x4, fixed_abs, tag = 'smem constant byte address 0x4 - core index']
  #allocation1 [shape = 'u32[72,128]{1,0:T(1,128)}', space=vmem, size = 0x9000, scoped, tag = 'internal scratch']
  %s0 = inlined_call_operand.hbm [shape: f32[8,32], index: 0, kind: input, shape index: {}]
  %s1 = inlined_call_operand.hbm [shape: f32[8,32], index: 1, kind: input, shape index: {}]
  %s2 = inlined_call_operand.vmem [shape: f32[32,96], index: 2, kind: input, shape index: {}]
  %s3 = inlined_call_operand.vmem [shape: f32[1,96], index: 3, kind: input, shape index: {}]
  %s4 = inlined_call_operand.hbm [shape: f32[8,32], index: 4, kind: input, shape index: {}]
  %s5 = inlined_call_operand.vmem [shape: f32[32,32], index: 5, kind: input, shape index: {}]
  %s6 = inlined_call_operand.vmem [shape: f32[32,32], index: 6, kind: input, shape index: {}]
  %s7 = inlined_call_operand.hbm [shape: f32[32,32], index: 7, kind: input, shape index: {}]
  %s8 = inlined_call_operand.hbm [shape: f32[32,64], index: 8, kind: input, shape index: {}]
  %s9 = inlined_call_operand.vmem [shape: f32[1,64], index: 9, kind: input, shape index: {}]
  %s10 = inlined_call_operand.vmem [shape: f32[64,32], index: 10, kind: input, shape index: {}]
  %s11 = inlined_call_operand.vmem [shape: f32[1,32], index: 11, kind: input, shape index: {}]
  %s12 = inlined_call_operand.hbm [shape: f32[8,32], index: 12, kind: output, shape index: {}]
  %s13 = sld [smem:[#allocation0]]
  $region78: #{tpu_custom_call.1} parent=0
    _
  %s15 = ssub.s32 1, %s13
  %s16 = scalar_select 0, %s15, %s13
  $region1: #{tpu_custom_call.1} parent=0
    #allocation2 [shape = 'u8[4096]{0}', space=vmem, size = 0x1000, scoped, tag = 'input window, operand 0, single buffered']
    #allocation3 [shape = 's32[1]{0}', space=sflag, size = 0x4, scoped, tag = 'scoped memory for tpu_custom_call.1']
    #allocation4 [shape = 's32[1]{0}', space=sflag, size = 0x4, scoped, tag = 'scoped memory for tpu_custom_call.1']
    #allocation5 [shape = 'u8[4096]{0}', space=vmem, size = 0x1000, scoped, tag = 'input window, operand 1, single buffered']
    #allocation6 [shape = 's32[1]{0}', space=sflag, size = 0x4, scoped, tag = 'scoped memory for tpu_custom_call.1']
    #allocation7 [shape = 'u8[4096]{0}', space=vmem, size = 0x1000, scoped, tag = 'input window, operand 4, single buffered']
    #allocation8 [shape = 'u8[16384]{0}', space=vmem, size = 0x4000, scoped, tag = 'input window, operand 7, single buffered']
    #allocation9 [shape = 's32[1]{0}', space=sflag, size = 0x4, scoped, tag = 'scoped memory for tpu_custom_call.1']
    #allocation10 [shape = 'u8[16384]{0}', space=vmem, size = 0x4000, scoped, tag = 'input window, operand 8, single buffered']
    #allocation11 [shape = 'u8[4096]{0}', space=vmem, size = 0x1000, scoped, tag = 'output window, operand 0, single buffered']
    %17 = vsyncpa [#allocation3], 0
    %18 = vsyncpa [#allocation6], 0
    %19 = vsyncpa [#allocation9], 0
    %20 = vsyncpa [#allocation4], 0
    // Predicated region
    $region2: #{tpu_custom_call.1} parent=1 // pred_check
      _
    $region3: #{tpu_custom_call.1} parent=1 // pred_check_branch
      %22 = sbr.rel (0) target = $region5
    $region4: #{tpu_custom_call.1} parent=1 // pred_region
      %24 = vsyncadd [#allocation3], 0
      %s26 = sshll.u32 %s0, 4
      %s27 = int_to_ptr.hbm [resolvable:$true] %s26
      %s28 = sshll.u32 [#allocation2], 4
      %s29 = int_to_ptr.vmem [resolvable:$true] %s28
      %31 = dma.hbm_to_vmem [thread:$0]  %s27, 128, %s29, [#allocation3]
    $region5: #{tpu_custom_call.1} parent=1 // pred_fallthru
      _
    // Predicated region
    $region6: #{tpu_custom_call.1} parent=1 // pred_check
      _
    $region7: #{tpu_custom_call.1} parent=1 // pred_check_branch
      %33 = sbr.rel (0) target = $region9
    $region8: #{tpu_custom_call.1} parent=1 // pred_region
      %35 = vsyncadd [#allocation6], 0
      %s37 = sshll.u32 %s1, 4
      %s38 = int_to_ptr.hbm [resolvable:$true] %s37
      %s39 = sshll.u32 [#allocation5], 4
      %s40 = int_to_ptr.vmem [resolvable:$true] %s39
      %42 = dma.hbm_to_vmem [thread:$0]  %s38, 128, %s40, [#allocation6]
    $region9: #{tpu_custom_call.1} parent=1 // pred_fallthru
      _
    // Predicated region
    $region10: #{tpu_custom_call.1} parent=1 // pred_check
      _
    $region11: #{tpu_custom_call.1} parent=1 // pred_check_branch
      %44 = sbr.rel (0) target = $region13
    $region12: #{tpu_custom_call.1} parent=1 // pred_region
      _
    $region13: #{tpu_custom_call.1} parent=1 // pred_fallthru
      _
    // Predicated region
    $region14: #{tpu_custom_call.1} parent=1 // pred_check
      _
    $region15: #{tpu_custom_call.1} parent=1 // pred_check_branch
      %46 = sbr.rel (0) target = $region17
    $region16: #{tpu_custom_call.1} parent=1 // pred_region
      _
    $region17: #{tpu_custom_call.1} parent=1 // pred_fallthru
      _
    // Predicated region
    $region18: #{tpu_custom_call.1} parent=1 // pred_check
      _
    $region19: #{tpu_custom_call.1} parent=1 // pred_check_branch
      %48 = sbr.rel (0) target = $region21
    $region20: #{tpu_custom_call.1} parent=1 // pred_region
      %50 = vsyncadd [#allocation6], 0
      %s52 = sshll.u32 %s4, 4
      %s53 = int_to_ptr.hbm [resolvable:$true] %s52
      %s54 = sshll.u32 [#allocation7], 4
      %s55 = int_to_ptr.vmem [resolvable:$true] %s54
      %57 = dma.hbm_to_vmem [thread:$0]  %s53, 128, %s55, [#allocation6]
    $region21: #{tpu_custom_call.1} parent=1 // pred_fallthru
      _
    // Predicated region
    $region22: #{tpu_custom_call.1} parent=1 // pred_check
      _
    $region23: #{tpu_custom_call.1} parent=1 // pred_check_branch
      %59 = sbr.rel (0) target = $region25
    $region24: #{tpu_custom_call.1} parent=1 // pred_region
      _
    $region25: #{tpu_custom_call.1} parent=1 // pred_fallthru
      _
    // Predicated region
    $region26: #{tpu_custom_call.1} parent=1 // pred_check
      _
    $region27: #{tpu_custom_call.1} parent=1 // pred_check_branch
      %61 = sbr.rel (0) target = $region29
    $region28: #{tpu_custom_call.1} parent=1 // pred_region
      _
    $region29: #{tpu_custom_call.1} parent=1 // pred_fallthru
      _
    // Predicated region
    $region30: #{tpu_custom_call.1} parent=1 // pred_check
      _
    $region31: #{tpu_custom_call.1} parent=1 // pred_check_branch
      %63 = sbr.rel (0) target = $region33
    $region32: #{tpu_custom_call.1} parent=1 // pred_region
      %65 = vsyncadd [#allocation9], 0
      %s66 = sshll.u32 %s7, 4
      %s67 = int_to_ptr.hbm [resolvable:$true] %s66
      %s68 = sshll.u32 [#allocation8], 4
      %s69 = int_to_ptr.vmem [resolvable:$true] %s68
      %74 = dma.hbm_to_vmem [thread:$0]  %s67, 512, %s69, [#allocation9], 128, 128, 8
    $region33: #{tpu_custom_call.1} parent=1 // pred_fallthru
      _
    // Predicated region
    $region34: #{tpu_custom_call.1} parent=1 // pred_check
      _
    $region35: #{tpu_custom_call.1} parent=1 // pred_check_branch
      %76 = sbr.rel (0) target = $region37
    $region36: #{tpu_custom_call.1} parent=1 // pred_region
      %78 = vsyncadd [#allocation9], 0
      %s79 = sshll.u32 %s8, 4
      %s80 = int_to_ptr.hbm [resolvable:$true] %s79
      %s81 = sshll.u32 [#allocation10], 4
      %s82 = int_to_ptr.vmem [resolvable:$true] %s81
      %87 = dma.hbm_to_vmem [thread:$0]  %s80, 512, %s82, [#allocation9], 128, 128, 8
    $region37: #{tpu_custom_call.1} parent=1 // pred_fallthru
      _
    // Predicated region
    $region38: #{tpu_custom_call.1} parent=1 // pred_check
      _
    $region39: #{tpu_custom_call.1} parent=1 // pred_check_branch
      %89 = sbr.rel (0) target = $region41
    $region40: #{tpu_custom_call.1} parent=1 // pred_region
      _
    $region41: #{tpu_custom_call.1} parent=1 // pred_fallthru
      _
    // Predicated region
    $region42: #{tpu_custom_call.1} parent=1 // pred_check
      _
    $region43: #{tpu_custom_call.1} parent=1 // pred_check_branch
      %91 = sbr.rel (0) target = $region45
    $region44: #{tpu_custom_call.1} parent=1 // pred_region
      _
    $region45: #{tpu_custom_call.1} parent=1 // pred_fallthru
      _
    // Predicated region
    $region46: #{tpu_custom_call.1} parent=1 // pred_check
      _
    $region47: #{tpu_custom_call.1} parent=1 // pred_check_branch
      %93 = sbr.rel (0) target = $region49
    $region48: #{tpu_custom_call.1} parent=1 // pred_region
      _
    $region49: #{tpu_custom_call.1} parent=1 // pred_fallthru
      _
    // Predicated region
    $region50: #{tpu_custom_call.1} parent=1 // pred_check
      _
    $region51: #{tpu_custom_call.1} parent=1 // pred_check_branch
      %95 = sbr.rel (0) target = $region53
    $region52: #{tpu_custom_call.1} parent=1 // pred_region
      %97 = dma.done [#allocation3], 128
    $region53: #{tpu_custom_call.1} parent=1 // pred_fallthru
      _
    // Predicated region
    $region54: #{tpu_custom_call.1} parent=1 // pred_check
      _
    $region55: #{tpu_custom_call.1} parent=1 // pred_check_branch
      %99 = sbr.rel (0) target = $region57
    $region56: #{tpu_custom_call.1} parent=1 // pred_region
      %101 = dma.done [#allocation6], 128
    $region57: #{tpu_custom_call.1} parent=1 // pred_fallthru
      _
    // Predicated region
    $region58: #{tpu_custom_call.1} parent=1 // pred_check
      _
    $region59: #{tpu_custom_call.1} parent=1 // pred_check_branch
      %103 = sbr.rel (0) target = $region61
    $region60: #{tpu_custom_call.1} parent=1 // pred_region
      %105 = dma.done [#allocation6], 128
    $region61: #{tpu_custom_call.1} parent=1 // pred_fallthru
      _
    // Predicated region
    $region62: #{tpu_custom_call.1} parent=1 // pred_check
      _
    $region63: #{tpu_custom_call.1} parent=1 // pred_check_branch
      %107 = sbr.rel (0) target = $region65
    $region64: #{tpu_custom_call.1} parent=1 // pred_region
      %109 = dma.done [#allocation9], 512
    $region65: #{tpu_custom_call.1} parent=1 // pred_fallthru
      _
    // Predicated region
    $region66: #{tpu_custom_call.1} parent=1 // pred_check
      _
    $region67: #{tpu_custom_call.1} parent=1 // pred_check_branch
      %111 = sbr.rel (0) target = $region69
    $region68: #{tpu_custom_call.1} parent=1 // pred_region
      %113 = dma.done [#allocation9], 512
    $region69: #{tpu_custom_call.1} parent=1 // pred_fallthru
      _
    %v114 = vld [vmem:[#allocation2] sm:$0xff]
    %v115 = vld [vmem:[#allocation5] sm:$0xff]
    %v116 = vadd.f32 %v114, %v115
    %v117 = vld [vmem:[%s2] sm:$0xff]
    %v118 = vld [vmem:[%s2 + $0x8] sm:$0xff]
    %v119 = vld [vmem:[%s2 + $0x10] sm:$0xff]
    %v120 = vld [vmem:[%s2 + $0x18] sm:$0xff]
    %v121 = vld [vmem:[%s3] sm:$0x1]
    %v123 = vperm.slane %v121, 0
    %vm125 = vcmask 261120
    %v127 = vsel %vm125, %v116, 0
    %129 = vmatpush.msra.mxu0 0.0
    %130 = vmatpush.msra.mxu0 0.0
    %131 = vmatpush.msra.mxu0 0.0
    %132 = vmatpush.msra.mxu0 0.0
    %133 = vmatpush.msra.mxu0 0.0
    %134 = vmatpush.msra.mxu0 0.0
    %135 = vmatpush.msra.mxu0 0.0
    %136 = vmatpush.msra.mxu0 0.0
    %137 = vmatpush.msra.mxu0 0.0
    %138 = vmatpush.msra.mxu0 0.0
    %139 = vmatpush.msra.mxu0 0.0
    %140 = vmatpush.msra.mxu0 0.0
    %141 = vmatpush.msra.mxu0 %v120
    %142 = vmatpush.msra.mxu0 %v119
    %143 = vmatpush.msra.mxu0 %v118
    %144 = vmatpush.msra.mxu0 %v117
    %145 = vmatmul.f32.gmra.mxu0 %v127
    %v146 = vpop.f32.mrf.mxu0
    %v147 = vadd.f32 %v123, %v146
    %148 = vdwg.mxu0
    %150 = vrot.lane.b32.xlu0 %v147, 96
    %v151 = vpop.permute.xlu0 %150
    %153 = vxpose.xlu0.b32.start [1/16] %v151, 128
    %154 = vxpose.xlu0.b32.cont [2/16] 0.0, 128
    %155 = vxpose.xlu0.b32.cont [3/16] 0.0, 128
    %156 = vxpose.xlu0.b32.cont [4/16] 0.0, 128
    %157 = vxpose.xlu0.b32.cont [5/16] 0.0, 128
    %158 = vxpose.xlu0.b32.cont [6/16] 0.0, 128
    %159 = vxpose.xlu0.b32.cont [7/16] 0.0, 128
    %160 = vxpose.xlu0.b32.cont [8/16] 0.0, 128
    %161 = vxpose.xlu0.b32.cont [9/16] 0.0, 128
    %162 = vxpose.xlu0.b32.cont [10/16] 0.0, 128
    %163 = vxpose.xlu0.b32.cont [11/16] 0.0, 128
    %164 = vxpose.xlu0.b32.cont [12/16] 0.0, 128
    %165 = vxpose.xlu0.b32.cont [13/16] 0.0, 128
    %166 = vxpose.xlu0.b32.cont [14/16] 0.0, 128
    %167 = vxpose.xlu0.b32.cont [15/16] 0.0, 128
    %168 = vxpose.xlu0.b32.end [16/16] 0.0, 128
    %v169 = vpop.trf.xlu0
    %v170 = vpop.trf.xlu0
    %v171 = vpop.trf.xlu0
    %v172 = vpop.trf.xlu0
    %v173 = vpop.trf.xlu0
    %v174 = vpop.trf.xlu0
    %v175 = vpop.trf.xlu0
    %v176 = vpop.trf.xlu0
    %v177 = vpop.trf.xlu0
    %v178 = vpop.trf.xlu0
    %v179 = vpop.trf.xlu0
    %v180 = vpop.trf.xlu0
    %v181 = vpop.trf.xlu0
    %v182 = vpop.trf.xlu0
    %v183 = vpop.trf.xlu0
    %v184 = vpop.trf.xlu0
    %189 = vrot.lane.b32.xlu0 %v169, 8
    %v190 = vpop.permute.xlu0 %189
    %191 = vrot.lane.b32.xlu0 %v170, 8
    %v192 = vpop.permute.xlu0 %191
    %193 = vrot.lane.b32.xlu0 %v171, 8
    %v194 = vpop.permute.xlu0 %193
    %195 = vrot.lane.b32.xlu0 %v172, 8
    %v196 = vpop.permute.xlu0 %195
    %201 = vrot.lane.b32.xlu0 %v169, 16
    %v202 = vpop.permute.xlu0 %201
    %203 = vrot.lane.b32.xlu0 %v170, 16
    %v204 = vpop.permute.xlu0 %203
    %205 = vrot.lane.b32.xlu0 %v171, 16
    %v206 = vpop.permute.xlu0 %205
    %207 = vrot.lane.b32.xlu0 %v172, 16
    %v208 = vpop.permute.xlu0 %207
    %213 = vrot.lane.b32.xlu0 %v169, 24
    %v214 = vpop.permute.xlu0 %213
    %215 = vrot.lane.b32.xlu0 %v170, 24
    %v216 = vpop.permute.xlu0 %215
    %217 = vrot.lane.b32.xlu0 %v171, 24
    %v218 = vpop.permute.xlu0 %217
    %219 = vrot.lane.b32.xlu0 %v172, 24
    %v220 = vpop.permute.xlu0 %219
    %vm225 = vcmask 64512
    %v226 = vsel %vm225, %v169, %v190
    %v227 = vsel %vm225, %v170, %v192
    %v228 = vsel %vm225, %v171, %v194
    %v229 = vsel %vm225, %v172, %v196
    %vm230 = vcmask 130048
    %v231 = vsel %vm230, %v226, %v202
    %v232 = vsel %vm230, %v227, %v204
    %v233 = vsel %vm230, %v228, %v206
    %v234 = vsel %vm230, %v229, %v208
    %vm235 = vcmask 195584
    %v236 = vsel %vm235, %v231, %v214
    %v237 = vsel %vm235, %v232, %v216
    %v238 = vsel %vm235, %v233, %v218
    %v239 = vsel %vm235, %v234, %v220
    %v240 = vld [vmem:[%s5] sm:$0xff]
    %v241 = vld [vmem:[%s5 + $0x8] sm:$0xff]
    %v242 = vld [vmem:[%s5 + $0x10] sm:$0xff]
    %v243 = vld [vmem:[%s5 + $0x18] sm:$0xff]
    %v244 = vmul.f32 %v236, %v240
    %v245 = vmul.f32 %v237, %v241
    %v246 = vmul.f32 %v238, %v242
    %v247 = vmul.f32 %v239, %v243
    %v248 = vsel %vm125, %v147, 0
    %250 = vmatpush.msra.mxu0 0.0
    %251 = vmatpush.msra.mxu0 0.0
    %252 = vmatpush.msra.mxu0 0.0
    %253 = vmatpush.msra.mxu0 0.0
    %254 = vmatpush.msra.mxu0 0.0
    %255 = vmatpush.msra.mxu0 0.0
    %256 = vmatpush.msra.mxu0 0.0
    %257 = vmatpush.msra.mxu0 0.0
    %258 = vmatpush.msra.mxu0 0.0
    %259 = vmatpush.msra.mxu0 0.0
    %260 = vmatpush.msra.mxu0 0.0
    %261 = vmatpush.msra.mxu0 0.0
    %262 = vmatpush.msra.mxu0 %v247
    %263 = vmatpush.msra.mxu0 %v246
    %264 = vmatpush.msra.mxu0 %v245
    %265 = vmatpush.msra.mxu0 %v244
    %266 = vmatmul.f32.gmra.mxu0 %v248
    %v267 = vpop.f32.mrf.mxu0
    %v268 = vadd.f32 0.0, %v267
    %269 = vdwg.mxu0
    %v270 = vmul.f32 %v268, 0.35355338
    %v271 = vld [vmem:[#allocation7] sm:$0xff]
    %v272 = vadd.f32 %v270, %v271
    %v273 = vsel %vm125, %v272, -inf
    %274 = vmax.xlane.f32.xlu0 %v273
    %v275 = vpop.xlane.xlu0 %274
    %v276 = vsub.f32 %v272, %v275
    %v277 = vmul.f32 %v276, 1.442695
    %v278 = vpow.pop %v277
    %v279 = vld [vmem:[%s6] sm:$0xff]
    %v280 = vld [vmem:[%s6 + $0x8] sm:$0xff]
    %v281 = vld [vmem:[%s6 + $0x10] sm:$0xff]
    %v282 = vld [vmem:[%s6 + $0x18] sm:$0xff]
    %v284 = vsel %vm125, %v278, 0
    %286 = vmatpush.msra.mxu0 0.0
    %287 = vmatpush.msra.mxu0 0.0
    %288 = vmatpush.msra.mxu0 0.0
    %289 = vmatpush.msra.mxu0 0.0
    %290 = vmatpush.msra.mxu0 0.0
    %291 = vmatpush.msra.mxu0 0.0
    %292 = vmatpush.msra.mxu0 0.0
    %293 = vmatpush.msra.mxu0 0.0
    %294 = vmatpush.msra.mxu0 0.0
    %295 = vmatpush.msra.mxu0 0.0
    %296 = vmatpush.msra.mxu0 0.0
    %297 = vmatpush.msra.mxu0 0.0
    %298 = vmatpush.msra.mxu0 %v282
    %299 = vmatpush.msra.mxu0 %v281
    %300 = vmatpush.msra.mxu0 %v280
    %301 = vmatpush.msra.mxu0 %v279
    %302 = vmatmul.f32.gmra.mxu0 %v284
    %v303 = vpop.f32.mrf.mxu0
    %v304 = vadd.f32 0.0, %v303
    %305 = vdwg.mxu0
    %v306 = vmax.f32 %v304, 1e-30
    %v307 = vrcp.pop %v306
    %v308 = vmul.f32 %v306, %v307
    %v309 = vsub.f32 1.0, %v308
    %v310 = vmul.f32 %v307, %v309
    %v311 = vadd.f32 %v307, %v310
    %vm312 = vweird.f32 %v306
    %vm313 = vweird.f32 %v307
    %vm314 = vmor %vm312, %vm313
    %v315 = vsel %vm314, %v307, %v311
    %v316 = vand.u32 2147483647, %v306
    %vm317 = vcmp.eq.f32.partialorder %v316, 8.507059e+37
    %v318 = vand.u32 %v306, 2147483648
    %v319 = vor.u32 1.1754944e-38, %v318
    %v320 = vsel %vm317, %v319, %v315
    %v321 = vmul.f32 %v278, %v320
    %v322 = vld [vmem:[#allocation8] sm:$0xff]
    %v323 = vld [vmem:[#allocation8 + $0x8] sm:$0xff]
    %v324 = vld [vmem:[#allocation8 + $0x10] sm:$0xff]
    %v325 = vld [vmem:[#allocation8 + $0x18] sm:$0xff]
    %330 = vrot.lane.b32.xlu0 %v322, 64
    %v331 = vpop.permute.xlu0 %330
    %332 = vrot.lane.b32.xlu0 %v323, 64
    %v333 = vpop.permute.xlu0 %332
    %334 = vrot.lane.b32.xlu0 %v324, 64
    %v335 = vpop.permute.xlu0 %334
    %336 = vrot.lane.b32.xlu0 %v325, 64
    %v337 = vpop.permute.xlu0 %336
    %v342 = vmul.f32 %v147, %v331
    %v343 = vmul.f32 %v147, %v333
    %v344 = vmul.f32 %v147, %v335
    %v345 = vmul.f32 %v147, %v337
    %350 = vrot.lane.b32.xlu0 %v342, 64
    %v351 = vpop.permute.xlu0 %350
    %352 = vrot.lane.b32.xlu0 %v343, 64
    %v353 = vpop.permute.xlu0 %352
    %354 = vrot.lane.b32.xlu0 %v344, 64
    %v355 = vpop.permute.xlu0 %354
    %356 = vrot.lane.b32.xlu0 %v345, 64
    %v357 = vpop.permute.xlu0 %356
    %v363 = vsel %vm125, %v321, 0
    %365 = vmatpush.msra.mxu0 0.0
    %366 = vmatpush.msra.mxu0 0.0
    %367 = vmatpush.msra.mxu0 0.0
    %368 = vmatpush.msra.mxu0 0.0
    %369 = vmatpush.msra.mxu0 0.0
    %370 = vmatpush.msra.mxu0 0.0
    %371 = vmatpush.msra.mxu0 0.0
    %372 = vmatpush.msra.mxu0 0.0
    %373 = vmatpush.msra.mxu0 0.0
    %374 = vmatpush.msra.mxu0 0.0
    %375 = vmatpush.msra.mxu0 0.0
    %376 = vmatpush.msra.mxu0 0.0
    %377 = vmatpush.msra.mxu0 %v357
    %378 = vmatpush.msra.mxu0 %v355
    %379 = vmatpush.msra.mxu0 %v353
    %380 = vmatpush.msra.mxu0 %v351
    %381 = vmatmul.f32.gmra.mxu0 %v363
    %v382 = vpop.f32.mrf.mxu0
    %v383 = vadd.f32 0.0, %v382
    %384 = vdwg.mxu0
    %v385 = vld [vmem:[#allocation10] sm:$0xff]
    %v386 = vld [vmem:[#allocation10 + $0x8] sm:$0xff]
    %v387 = vld [vmem:[#allocation10 + $0x10] sm:$0xff]
    %v388 = vld [vmem:[#allocation10 + $0x18] sm:$0xff]
    %v389 = vld [vmem:[%s9] sm:$0x1]
    %v391 = vperm.slane %v389, 0
    %v394 = vsel %vm125, %v383, 0
    %396 = vmatpush.msra.mxu0 0.0
    %397 = vmatpush.msra.mxu0 0.0
    %398 = vmatpush.msra.mxu0 0.0
    %399 = vmatpush.msra.mxu0 0.0
    %400 = vmatpush.msra.mxu0 0.0
    %401 = vmatpush.msra.mxu0 0.0
    %402 = vmatpush.msra.mxu0 0.0
    %403 = vmatpush.msra.mxu0 0.0
    %404 = vmatpush.msra.mxu0 0.0
    %405 = vmatpush.msra.mxu0 0.0
    %406 = vmatpush.msra.mxu0 0.0
    %407 = vmatpush.msra.mxu0 0.0
    %408 = vmatpush.msra.mxu0 %v388
    %409 = vmatpush.msra.mxu0 %v387
    %410 = vmatpush.msra.mxu0 %v386
    %411 = vmatpush.msra.mxu0 %v385
    %412 = vmatmul.f32.gmra.mxu0 %v394
    %v413 = vpop.f32.mrf.mxu0
    %v414 = vadd.f32 %v391, %v413
    %415 = vdwg.mxu0
    %v416 = vmax.f32 %v414, 0.0
    %v417 = vld [vmem:[%s10] sm:$0xff]
    %v418 = vld [vmem:[%s10 + $0x8] sm:$0xff]
    %v419 = vld [vmem:[%s10 + $0x10] sm:$0xff]
    %v420 = vld [vmem:[%s10 + $0x18] sm:$0xff]
    %v421 = vld [vmem:[%s10 + $0x20] sm:$0xff]
    %v422 = vld [vmem:[%s10 + $0x28] sm:$0xff]
    %v423 = vld [vmem:[%s10 + $0x30] sm:$0xff]
    %v424 = vld [vmem:[%s10 + $0x38] sm:$0xff]
    %v425 = vld [vmem:[%s11] sm:$0x1]
    %v427 = vperm.slane %v425, 0
    %vm429 = vcmask 523264
    %v431 = vsel %vm429, %v416, 0
    %433 = vmatpush.msra.mxu0 0.0
    %434 = vmatpush.msra.mxu0 0.0
    %435 = vmatpush.msra.mxu0 0.0
    %436 = vmatpush.msra.mxu0 0.0
    %437 = vmatpush.msra.mxu0 0.0
    %438 = vmatpush.msra.mxu0 0.0
    %439 = vmatpush.msra.mxu0 0.0
    %440 = vmatpush.msra.mxu0 0.0
    %441 = vmatpush.msra.mxu0 %v424
    %442 = vmatpush.msra.mxu0 %v423
    %443 = vmatpush.msra.mxu0 %v422
    %444 = vmatpush.msra.mxu0 %v421
    %445 = vmatpush.msra.mxu0 %v420
    %446 = vmatpush.msra.mxu0 %v419
    %447 = vmatpush.msra.mxu0 %v418
    %448 = vmatpush.msra.mxu0 %v417
    %449 = vmatmul.f32.gmra.mxu0 %v431
    %v450 = vpop.f32.mrf.mxu0
    %v451 = vadd.f32 %v427, %v450
    %452 = vdwg.mxu0
    %453 = vst.msk [vmem:[#allocation11] sm:$0xff] %vm125, %v451
    // Predicated region
    $region70: #{tpu_custom_call.1} parent=1 // pred_check
      _
    $region71: #{tpu_custom_call.1} parent=1 // pred_check_branch
      %455 = sbr.rel (0) target = $region73
    $region72: #{tpu_custom_call.1} parent=1 // pred_region
      %457 = vsyncadd [#allocation4], 0
      %s459 = sshll.u32 [#allocation11], 4
      %s460 = int_to_ptr.vmem [resolvable:$true] %s459
      %s461 = sshll.u32 %s12, 4
      %s462 = int_to_ptr.hbm [resolvable:$true] %s461
      %464 = dma.vmem_to_hbm [thread:$0]  %s460, 128, %s462, [#allocation4]
    $region73: #{tpu_custom_call.1} parent=1 // pred_fallthru
      _
    // Predicated region
    $region74: #{tpu_custom_call.1} parent=1 // pred_check
      _
    $region75: #{tpu_custom_call.1} parent=1 // pred_check_branch
      %466 = sbr.rel (0) target = $region77
    $region76: #{tpu_custom_call.1} parent=1 // pred_region
      %468 = dma.done [#allocation4], 128
    $region77: #{tpu_custom_call.1} parent=1 // pred_fallthru
      _
    %469 = vsyncpa [#allocation3], 1
    %470 = vsyncpa [#allocation6], 1
    %471 = vsyncpa [#allocation9], 1
    %472 = vsyncpa [#allocation4], 1

</llo_original>
